<compile_context>
chip_gen: v5e
topology: v5e:2x2
jax: 0.10.0
libtpu: 0.0.40
codegen_flags: <defaults>
</compile_context>

<pallas_src>
import jax
import jax.numpy as jnp
import numpy as np
from jax.experimental import pallas as pl
from jax.experimental.pallas import tpu as pltpu


# ---------------------------------------------------------------------------
# Model configuration (small, consistent with the PyTorch module's __init__).
# ---------------------------------------------------------------------------
LAYERS = [
    dict(out_channels=8, kernel_size=3, stride=1, padding=1,
         batch_norm=True, max_pool=True),
    dict(out_channels=16, kernel_size=3, stride=1, padding=1,
         batch_norm=False, max_pool=True),
]
INPUT_SHAPE = 32      # 1-D input length
D_LATENT = 32
BATCH = 2
BN_EPS = 1e-5


def calculate_conv_output_size(input_size, kernel_size, stride, padding):
    return (input_size - kernel_size + 2 * padding) // stride + 1


# ---------------------------------------------------------------------------
# Fused Pallas kernel
# ---------------------------------------------------------------------------
def _make_fused_kernel(metas, B, d_latent):
    """Build the fused forward kernel for the given (static) layer metadata."""
    n_layers = len(metas)

    def kernel(*refs):
        x_ref = refs[0]
        layer_refs = refs[1:1 + 2 * n_layers]          # per layer: (w, shift)
        wfc_ref = refs[1 + 2 * n_layers]               # (L, C, D)
        bfc_ref = refs[2 + 2 * n_layers]               # (1, D)
        o_ref = refs[3 + 2 * n_layers]                 # (B, D)
        pad_refs = refs[4 + 2 * n_layers:]             # per-layer VMEM pad scratch

        h = x_ref[...]                                 # (B, L0, 1) f32
        for li, m in enumerate(metas):
            w_ref = layer_refs[2 * li]                 # (K, Cin, Cout), BN scale folded
            shift_ref = layer_refs[2 * li + 1]         # (1, Cout)
            pad_ref = pad_refs[li]                     # (B, Lin+2p, Cin) VMEM scratch
            k_sz, p = m["k"], m["p"]
            cin, cout = m["cin"], m["cout"]
            lin, lout = m["lin"], m["lout"]

            # In-VMEM zero padding: only touch the halo rows, then the interior.
            if p > 0:
                zeros_halo = jnp.zeros((B, p, cin), jnp.float32)
                pad_ref[:, 0:p, :] = zeros_halo
                pad_ref[:, p + lin:p + lin + p, :] = zeros_halo
                pad_ref[:, p:p + lin, :] = h
            else:
                pad_ref[...] = h

            # Conv (stride 1) as K shifted contractions over the channel dim.
            acc = None
            for k in range(k_sz):
                patch = pad_ref[:, k:k + lout, :].reshape(B * lout, cin)
                if cin == 1:
                    # K=1 contraction: VPU broadcast FMA, keep the MXU out of it.
                    term = patch * w_ref[k]            # (B*L,1)*(1,Cout)
                else:
                    term = jnp.dot(patch, w_ref[k],
                                   preferred_element_type=jnp.float32)
                acc = term if acc is None else acc + term

            # Folded BN / conv bias (scale already inside w), then ReLU.
            y = jnp.maximum(acc + shift_ref[...], 0.0).reshape(B, lout, cout)

            if m["pool"]:
                # MaxPool1d(2,2): pairwise max of adjacent positions (VALU),
                # channel lane dim untouched.
                y4 = y.reshape(B, lout // 2, 2, cout)
                y = jnp.maximum(y4[:, :, 0, :], y4[:, :, 1, :])
            h = y

        # FC: out[b, d] = sum_{l, c} h[b, l, c] * wfc[l, c, d] + b[d]
        # (the torch NCL flatten permutation is already folded into wfc).
        l_final = h.shape[1]
        acc_fc = None
        for l in range(l_final):
            term = jnp.dot(h[:, l, :], wfc_ref[l],
                           preferred_element_type=jnp.float32)
            acc_fc = term if acc_fc is None else acc_fc + term
        o_ref[...] = (acc_fc + bfc_ref[...]).astype(o_ref.dtype)

    return kernel


def quantized_conv_encoder_pallas(x, params):
    B, L = x.shape
    metas = params["metas"]
    d_latent = params["fc_b"].shape[0]

    # Metadata-only reshape (no HBM traffic): channels-last with C=1.
    x3 = x.reshape(B, L, 1).astype(jnp.float32)

    inputs = [x3]
    for lp in params["conv"]:
        inputs += [lp["w_kernel"], lp["shift_kernel"]]
    inputs += [params["fc_w_kernel"], params["fc_b"].reshape(1, d_latent)]

    scratch_shapes = [
        pltpu.VMEM((B, m["lin"] + 2 * m["p"], m["cin"]), jnp.float32)
        for m in metas
    ]

    kernel = _make_fused_kernel(metas, B, d_latent)

    # No grid: single invocation, whole arrays resident in VMEM.
    return pl.pallas_call(
        kernel,
        out_shape=jax.ShapeDtypeStruct((B, d_latent), jnp.float32),
        scratch_shapes=scratch_shapes,
    )(*inputs)


# ---------------------------------------------------------------------------
# Parameter construction (deterministic, in-script).
# ---------------------------------------------------------------------------
def init_params(key):
    metas = []
    conv_params = []
    in_channels = 1
    length = INPUT_SHAPE
    for cfg in LAYERS:
        k, s, p = cfg["kernel_size"], cfg["stride"], cfg["padding"]
        assert s == 1, "fused kernel supports stride=1 only"
        cout = cfg["out_channels"]
        lout = calculate_conv_output_size(length, k, s, p)
        pool = cfg.get("max_pool", False)
        if pool:
            assert lout % 2 == 0, "MaxPool1d(2,2) needs an even conv output length"
        metas.append(dict(k=k, p=p, cin=in_channels, cout=cout,
                          lin=length, lout=lout, pool=pool))

        key, kw, kb, kg, kbe, km, kv = jax.random.split(key, 7)
        # torch Conv1d weight layout: (Cout, Cin, K)
        w_torch = 0.1 * jax.random.normal(kw, (cout, in_channels, k), jnp.float32)
        b = 0.1 * jax.random.normal(kb, (cout,), jnp.float32)
        if cfg.get("batch_norm", False):
            gamma = 1.0 + 0.1 * jax.random.normal(kg, (cout,), jnp.float32)
            beta = 0.1 * jax.random.normal(kbe, (cout,), jnp.float32)
            mean = 0.1 * jax.random.normal(km, (cout,), jnp.float32)
            var = 1.0 + 0.1 * jnp.abs(jax.random.normal(kv, (cout,), jnp.float32))
            sc = gamma / jnp.sqrt(var + BN_EPS)
            scale = sc
            shift = (b - mean) * sc + beta
        else:
            scale = jnp.ones((cout,), jnp.float32)
            shift = b
        conv_params.append(dict(
            w_torch=w_torch,
            scale=scale,                               # (Cout,) for the reference
            shift=shift,                               # (Cout,) for the reference
            # kernel layout (K, Cin, Cout) with BN scale folded in (host-side).
            w_kernel=jnp.transpose(w_torch, (2, 1, 0)) * scale[None, None, :],
            shift_kernel=shift.reshape(1, cout),
        ))
        in_channels = cout
        length = lout // 2 if pool else lout

    c_final, l_final = in_channels, length
    feat = c_final * l_final
    # NOTE: the PyTorch module's _get_conv_output_size omits the MaxPool1d
    # halving; we size the FC to the actual flattened width so forward is
    # well-defined.
    key, kfw, kfb = jax.random.split(key, 3)
    fc_w = 0.05 * jax.random.normal(kfw, (feat, D_LATENT), jnp.float32)  # (F, D) == torch fc.weight.T, rows ordered (c, l)
    fc_b = 0.05 * jax.random.normal(kfb, (D_LATENT,), jnp.float32)
    # Fold the torch NCL flatten ordering into the FC weight so the kernel can
    # consume the (B, L, C) conv output directly (host-side, zero runtime cost).
    fc_w_kernel = fc_w.reshape(c_final, l_final, D_LATENT).transpose(1, 0, 2)  # (L, C, D)

    return dict(metas=metas, conv=conv_params, fc_w=fc_w, fc_b=fc_b,
                fc_w_kernel=fc_w_kernel)


# ---------------------------------------------------------------------------
# Pure-JAX reference mirroring the PyTorch forward (NCL layout, torch flatten).
# ---------------------------------------------------------------------------
def quantized_conv_encoder_ref(x, params):
    h = x[:, None, :].astype(jnp.float32)            # unsqueeze(1) -> (B, 1, L)
    for lp, m in zip(params["conv"], params["metas"]):
        y = jax.lax.conv_general_dilated(
            h, lp["w_torch"], window_strides=(1,),
            padding=[(m["p"], m["p"])],
            dimension_numbers=("NCH", "OIH", "NCH"))
        y = y * lp["scale"].reshape(1, -1, 1) + lp["shift"].reshape(1, -1, 1)
        y = jnp.maximum(y, 0.0)
        if m["pool"]:
            y = jax.lax.reduce_window(y, -jnp.inf, jax.lax.max,
                                      (1, 1, 2), (1, 1, 2), "VALID")
        h = y
    h = h.reshape(h.shape[0], -1)                    # torch .view(B, -1) on (B, C, L)
    return jnp.dot(h, params["fc_w"]) + params["fc_b"]


if __name__ == "__main__":
    key = jax.random.PRNGKey(0)
    key, kx = jax.random.split(key)
    x = jax.random.uniform(kx, (BATCH, INPUT_SHAPE), jnp.float32)

    params = init_params(key)

    out = quantized_conv_encoder_pallas(x, params)
    out = jax.block_until_ready(out)

    ref = quantized_conv_encoder_ref(x, params)
    np.testing.assert_allclose(np.asarray(out), np.asarray(ref),
                               rtol=1e-4, atol=1e-4)
    assert out.shape == (BATCH, D_LATENT)
    print("KERNEL_OK")
</pallas_src>

<mosaic_0001>
module attributes {stable_mosaic.version = 11 : i64} {
  func.func @kernel(%arg0: memref<2x32x1xf32, #tpu.memory_space<vmem>>, %arg1: memref<3x1x8xf32, #tpu.memory_space<vmem>>, %arg2: memref<1x8xf32, #tpu.memory_space<vmem>>, %arg3: memref<3x8x16xf32, #tpu.memory_space<vmem>>, %arg4: memref<1x16xf32, #tpu.memory_space<vmem>>, %arg5: memref<8x16x32xf32, #tpu.memory_space<vmem>>, %arg6: memref<1x32xf32, #tpu.memory_space<vmem>>, %arg7: memref<2x32xf32, #tpu.memory_space<vmem>>, %arg8: memref<2x34x1xf32, #tpu.memory_space<vmem>>, %arg9: memref<2x18x8xf32, #tpu.memory_space<vmem>>) attributes {dimension_semantics = [], scalar_prefetch = 0 : i64, scratch_operands = 2 : i64, tpu.core_type = #tpu.core_type<tc>} {
    %c0 = arith.constant 0 : index
    %c0_0 = arith.constant 0 : index
    %c0_1 = arith.constant 0 : index
    %0 = vector.load %arg0[%c0, %c0_0, %c0_1] : memref<2x32x1xf32, #tpu.memory_space<vmem>>, vector<2x32x1xf32>
    %cst = arith.constant 0.000000e+00 : f32
    %1 = vector.broadcast %cst : f32 to vector<2x1x1xf32>
    %c0_2 = arith.constant 0 : index
    %c0_3 = arith.constant 0 : index
    %c0_4 = arith.constant 0 : index
    %2 = vector.load %arg8[%c0_2, %c0_3, %c0_4] : memref<2x34x1xf32, #tpu.memory_space<vmem>>, vector<2x1x1xf32>
    tpu.vector_store %arg8[%c0_2, %c0_3, %c0_4], %1 {strides = array<i32>} : memref<2x34x1xf32, #tpu.memory_space<vmem>>, vector<2x1x1xf32>,
    %c0_5 = arith.constant 0 : index
    %c33 = arith.constant 33 : index
    %c0_6 = arith.constant 0 : index
    %3 = vector.load %arg8[%c0_5, %c33, %c0_6] : memref<2x34x1xf32, #tpu.memory_space<vmem>>, vector<2x1x1xf32>
    tpu.vector_store %arg8[%c0_5, %c33, %c0_6], %1 {strides = array<i32>} : memref<2x34x1xf32, #tpu.memory_space<vmem>>, vector<2x1x1xf32>,
    %c0_7 = arith.constant 0 : index
    %c1 = arith.constant 1 : index
    %c0_8 = arith.constant 0 : index
    %4 = vector.load %arg8[%c0_7, %c1, %c0_8] : memref<2x34x1xf32, #tpu.memory_space<vmem>>, vector<2x32x1xf32>
    tpu.vector_store %arg8[%c0_7, %c1, %c0_8], %0 {strides = array<i32>} : memref<2x34x1xf32, #tpu.memory_space<vmem>>, vector<2x32x1xf32>,
    %c0_9 = arith.constant 0 : index
    %c0_10 = arith.constant 0 : index
    %c0_11 = arith.constant 0 : index
    %5 = vector.load %arg8[%c0_9, %c0_10, %c0_11] : memref<2x34x1xf32, #tpu.memory_space<vmem>>, vector<2x32x1xf32>
    %6 = vector.shape_cast %5 : vector<2x32x1xf32> to vector<64x1xf32>
    %c0_12 = arith.constant 0 : index
    %c0_13 = arith.constant 0 : index
    %c0_14 = arith.constant 0 : index
    %7 = vector.load %arg1[%c0_12, %c0_13, %c0_14] : memref<3x1x8xf32, #tpu.memory_space<vmem>>, vector<1x1x8xf32>
    %8 = vector.shape_cast %7 : vector<1x1x8xf32> to vector<1x8xf32>
    %9 = vector.broadcast %6 : vector<64x1xf32> to vector<64x8xf32>
    %10 = vector.broadcast %8 : vector<1x8xf32> to vector<64x8xf32>
    %11 = arith.mulf %9, %10 : vector<64x8xf32>
    %c0_15 = arith.constant 0 : index
    %c1_16 = arith.constant 1 : index
    %c0_17 = arith.constant 0 : index
    %12 = vector.load %arg8[%c0_15, %c1_16, %c0_17] : memref<2x34x1xf32, #tpu.memory_space<vmem>>, vector<2x32x1xf32>
    %13 = vector.shape_cast %12 : vector<2x32x1xf32> to vector<64x1xf32>
    %c1_18 = arith.constant 1 : index
    %c0_19 = arith.constant 0 : index
    %c0_20 = arith.constant 0 : index
    %14 = vector.load %arg1[%c1_18, %c0_19, %c0_20] : memref<3x1x8xf32, #tpu.memory_space<vmem>>, vector<1x1x8xf32>
    %15 = vector.shape_cast %14 : vector<1x1x8xf32> to vector<1x8xf32>
    %16 = vector.broadcast %13 : vector<64x1xf32> to vector<64x8xf32>
    %17 = vector.broadcast %15 : vector<1x8xf32> to vector<64x8xf32>
    %18 = arith.mulf %16, %17 : vector<64x8xf32>
    %19 = arith.addf %11, %18 : vector<64x8xf32>
    %c0_21 = arith.constant 0 : index
    %c2 = arith.constant 2 : index
    %c0_22 = arith.constant 0 : index
    %20 = vector.load %arg8[%c0_21, %c2, %c0_22] : memref<2x34x1xf32, #tpu.memory_space<vmem>>, vector<2x32x1xf32>
    %21 = vector.shape_cast %20 : vector<2x32x1xf32> to vector<64x1xf32>
    %c2_23 = arith.constant 2 : index
    %c0_24 = arith.constant 0 : index
    %c0_25 = arith.constant 0 : index
    %22 = vector.load %arg1[%c2_23, %c0_24, %c0_25] : memref<3x1x8xf32, #tpu.memory_space<vmem>>, vector<1x1x8xf32>
    %23 = vector.shape_cast %22 : vector<1x1x8xf32> to vector<1x8xf32>
    %24 = vector.broadcast %21 : vector<64x1xf32> to vector<64x8xf32>
    %25 = vector.broadcast %23 : vector<1x8xf32> to vector<64x8xf32>
    %26 = arith.mulf %24, %25 : vector<64x8xf32>
    %27 = arith.addf %19, %26 : vector<64x8xf32>
    %c0_26 = arith.constant 0 : index
    %c0_27 = arith.constant 0 : index
    %28 = vector.load %arg2[%c0_26, %c0_27] : memref<1x8xf32, #tpu.memory_space<vmem>>, vector<1x8xf32>
    %29 = vector.broadcast %28 : vector<1x8xf32> to vector<64x8xf32>
    %30 = arith.addf %27, %29 : vector<64x8xf32>
    %cst_28 = arith.constant 0.000000e+00 : f32
    %31 = vector.broadcast %cst_28 : f32 to vector<64x8xf32>
    %32 = arith.maximumf %30, %31 : vector<64x8xf32>
    %33 = vector.shape_cast %32 : vector<64x8xf32> to vector<2x32x8xf32>
    %34 = vector.shape_cast %33 : vector<2x32x8xf32> to vector<2x16x2x8xf32>
    %35 = vector.extract_strided_slice %34 {offsets = [0, 0, 0, 0], sizes = [2, 16, 1, 8], strides = [1, 1, 1, 1]} : vector<2x16x2x8xf32> to vector<2x16x1x8xf32>
    %36 = vector.shape_cast %35 : vector<2x16x1x8xf32> to vector<2x16x8xf32>
    %37 = vector.extract_strided_slice %34 {offsets = [0, 0, 1, 0], sizes = [2, 16, 1, 8], strides = [1, 1, 1, 1]} : vector<2x16x2x8xf32> to vector<2x16x1x8xf32>
    %38 = vector.shape_cast %37 : vector<2x16x1x8xf32> to vector<2x16x8xf32>
    %39 = arith.maximumf %36, %38 : vector<2x16x8xf32>
    %cst_29 = arith.constant 0.000000e+00 : f32
    %40 = vector.broadcast %cst_29 : f32 to vector<2x1x8xf32>
    %c0_30 = arith.constant 0 : index
    %c0_31 = arith.constant 0 : index
    %c0_32 = arith.constant 0 : index
    %41 = vector.load %arg9[%c0_30, %c0_31, %c0_32] : memref<2x18x8xf32, #tpu.memory_space<vmem>>, vector<2x1x8xf32>
    tpu.vector_store %arg9[%c0_30, %c0_31, %c0_32], %40 {strides = array<i32>} : memref<2x18x8xf32, #tpu.memory_space<vmem>>, vector<2x1x8xf32>,
    %c0_33 = arith.constant 0 : index
    %c17 = arith.constant 17 : index
    %c0_34 = arith.constant 0 : index
    %42 = vector.load %arg9[%c0_33, %c17, %c0_34] : memref<2x18x8xf32, #tpu.memory_space<vmem>>, vector<2x1x8xf32>
    tpu.vector_store %arg9[%c0_33, %c17, %c0_34], %40 {strides = array<i32>} : memref<2x18x8xf32, #tpu.memory_space<vmem>>, vector<2x1x8xf32>,
    %c0_35 = arith.constant 0 : index
    %c1_36 = arith.constant 1 : index
    %c0_37 = arith.constant 0 : index
    %43 = vector.load %arg9[%c0_35, %c1_36, %c0_37] : memref<2x18x8xf32, #tpu.memory_space<vmem>>, vector<2x16x8xf32>
    tpu.vector_store %arg9[%c0_35, %c1_36, %c0_37], %39 {strides = array<i32>} : memref<2x18x8xf32, #tpu.memory_space<vmem>>, vector<2x16x8xf32>,
    %c0_38 = arith.constant 0 : index
    %c0_39 = arith.constant 0 : index
    %c0_40 = arith.constant 0 : index
    %44 = vector.load %arg9[%c0_38, %c0_39, %c0_40] : memref<2x18x8xf32, #tpu.memory_space<vmem>>, vector<2x16x8xf32>
    %45 = vector.shape_cast %44 : vector<2x16x8xf32> to vector<32x8xf32>
    %c0_41 = arith.constant 0 : index
    %c0_42 = arith.constant 0 : index
    %c0_43 = arith.constant 0 : index
    %46 = vector.load %arg3[%c0_41, %c0_42, %c0_43] : memref<3x8x16xf32, #tpu.memory_space<vmem>>, vector<1x8x16xf32>
    %47 = vector.shape_cast %46 : vector<1x8x16xf32> to vector<8x16xf32>
    %cst_44 = arith.constant dense<0.000000e+00> : vector<32x16xf32>
    %48 = tpu.matmul %45, %47, %cst_44 {dimension_numbers = #tpu.dot_dimension_numbers<[1], [0], [0], [1], [0, 0, 1, 1], [], []>} : vector<32x8xf32>, vector<8x16xf32>, vector<32x16xf32> -> vector<32x16xf32>
    %c0_45 = arith.constant 0 : index
    %c1_46 = arith.constant 1 : index
    %c0_47 = arith.constant 0 : index
    %49 = vector.load %arg9[%c0_45, %c1_46, %c0_47] : memref<2x18x8xf32, #tpu.memory_space<vmem>>, vector<2x16x8xf32>
    %50 = vector.shape_cast %49 : vector<2x16x8xf32> to vector<32x8xf32>
    %c1_48 = arith.constant 1 : index
    %c0_49 = arith.constant 0 : index
    %c0_50 = arith.constant 0 : index
    %51 = vector.load %arg3[%c1_48, %c0_49, %c0_50] : memref<3x8x16xf32, #tpu.memory_space<vmem>>, vector<1x8x16xf32>
    %52 = vector.shape_cast %51 : vector<1x8x16xf32> to vector<8x16xf32>
    %cst_51 = arith.constant dense<0.000000e+00> : vector<32x16xf32>
    %53 = tpu.matmul %50, %52, %cst_51 {dimension_numbers = #tpu.dot_dimension_numbers<[1], [0], [0], [1], [0, 0, 1, 1], [], []>} : vector<32x8xf32>, vector<8x16xf32>, vector<32x16xf32> -> vector<32x16xf32>
    %54 = arith.addf %48, %53 : vector<32x16xf32>
    %c0_52 = arith.constant 0 : index
    %c2_53 = arith.constant 2 : index
    %c0_54 = arith.constant 0 : index
    %55 = vector.load %arg9[%c0_52, %c2_53, %c0_54] : memref<2x18x8xf32, #tpu.memory_space<vmem>>, vector<2x16x8xf32>
    %56 = vector.shape_cast %55 : vector<2x16x8xf32> to vector<32x8xf32>
    %c2_55 = arith.constant 2 : index
    %c0_56 = arith.constant 0 : index
    %c0_57 = arith.constant 0 : index
    %57 = vector.load %arg3[%c2_55, %c0_56, %c0_57] : memref<3x8x16xf32, #tpu.memory_space<vmem>>, vector<1x8x16xf32>
    %58 = vector.shape_cast %57 : vector<1x8x16xf32> to vector<8x16xf32>
    %cst_58 = arith.constant dense<0.000000e+00> : vector<32x16xf32>
    %59 = tpu.matmul %56, %58, %cst_58 {dimension_numbers = #tpu.dot_dimension_numbers<[1], [0], [0], [1], [0, 0, 1, 1], [], []>} : vector<32x8xf32>, vector<8x16xf32>, vector<32x16xf32> -> vector<32x16xf32>
    %60 = arith.addf %54, %59 : vector<32x16xf32>
    %c0_59 = arith.constant 0 : index
    %c0_60 = arith.constant 0 : index
    %61 = vector.load %arg4[%c0_59, %c0_60] : memref<1x16xf32, #tpu.memory_space<vmem>>, vector<1x16xf32>
    %62 = vector.broadcast %61 : vector<1x16xf32> to vector<32x16xf32>
    %63 = arith.addf %60, %62 : vector<32x16xf32>
    %cst_61 = arith.constant 0.000000e+00 : f32
    %64 = vector.broadcast %cst_61 : f32 to vector<32x16xf32>
    %65 = arith.maximumf %63, %64 : vector<32x16xf32>
    %66 = vector.shape_cast %65 : vector<32x16xf32> to vector<2x16x16xf32>
    %67 = vector.shape_cast %66 : vector<2x16x16xf32> to vector<2x8x2x16xf32>
    %68 = vector.extract_strided_slice %67 {offsets = [0, 0, 0, 0], sizes = [2, 8, 1, 16], strides = [1, 1, 1, 1]} : vector<2x8x2x16xf32> to vector<2x8x1x16xf32>
    %69 = vector.shape_cast %68 : vector<2x8x1x16xf32> to vector<2x8x16xf32>
    %70 = vector.extract_strided_slice %67 {offsets = [0, 0, 1, 0], sizes = [2, 8, 1, 16], strides = [1, 1, 1, 1]} : vector<2x8x2x16xf32> to vector<2x8x1x16xf32>
    %71 = vector.shape_cast %70 : vector<2x8x1x16xf32> to vector<2x8x16xf32>
    %72 = arith.maximumf %69, %71 : vector<2x8x16xf32>
    %73 = vector.extract_strided_slice %72 {offsets = [0, 0, 0], sizes = [2, 1, 16], strides = [1, 1, 1]} : vector<2x8x16xf32> to vector<2x1x16xf32>
    %74 = vector.shape_cast %73 : vector<2x1x16xf32> to vector<2x16xf32>
    %c0_62 = arith.constant 0 : index
    %c0_63 = arith.constant 0 : index
    %c0_64 = arith.constant 0 : index
    %75 = vector.load %arg5[%c0_62, %c0_63, %c0_64] : memref<8x16x32xf32, #tpu.memory_space<vmem>>, vector<1x16x32xf32>
    %76 = vector.shape_cast %75 : vector<1x16x32xf32> to vector<16x32xf32>
    %cst_65 = arith.constant dense<0.000000e+00> : vector<2x32xf32>
    %77 = tpu.matmul %74, %76, %cst_65 {dimension_numbers = #tpu.dot_dimension_numbers<[1], [0], [0], [1], [0, 0, 1, 1], [], []>} : vector<2x16xf32>, vector<16x32xf32>, vector<2x32xf32> -> vector<2x32xf32>
    %78 = vector.extract_strided_slice %72 {offsets = [0, 1, 0], sizes = [2, 1, 16], strides = [1, 1, 1]} : vector<2x8x16xf32> to vector<2x1x16xf32>
    %79 = vector.shape_cast %78 : vector<2x1x16xf32> to vector<2x16xf32>
    %c1_66 = arith.constant 1 : index
    %c0_67 = arith.constant 0 : index
    %c0_68 = arith.constant 0 : index
    %80 = vector.load %arg5[%c1_66, %c0_67, %c0_68] : memref<8x16x32xf32, #tpu.memory_space<vmem>>, vector<1x16x32xf32>
    %81 = vector.shape_cast %80 : vector<1x16x32xf32> to vector<16x32xf32>
    %cst_69 = arith.constant dense<0.000000e+00> : vector<2x32xf32>
    %82 = tpu.matmul %79, %81, %cst_69 {dimension_numbers = #tpu.dot_dimension_numbers<[1], [0], [0], [1], [0, 0, 1, 1], [], []>} : vector<2x16xf32>, vector<16x32xf32>, vector<2x32xf32> -> vector<2x32xf32>
    %83 = arith.addf %77, %82 : vector<2x32xf32>
    %84 = vector.extract_strided_slice %72 {offsets = [0, 2, 0], sizes = [2, 1, 16], strides = [1, 1, 1]} : vector<2x8x16xf32> to vector<2x1x16xf32>
    %85 = vector.shape_cast %84 : vector<2x1x16xf32> to vector<2x16xf32>
    %c2_70 = arith.constant 2 : index
    %c0_71 = arith.constant 0 : index
    %c0_72 = arith.constant 0 : index
    %86 = vector.load %arg5[%c2_70, %c0_71, %c0_72] : memref<8x16x32xf32, #tpu.memory_space<vmem>>, vector<1x16x32xf32>
    %87 = vector.shape_cast %86 : vector<1x16x32xf32> to vector<16x32xf32>
    %cst_73 = arith.constant dense<0.000000e+00> : vector<2x32xf32>
    %88 = tpu.matmul %85, %87, %cst_73 {dimension_numbers = #tpu.dot_dimension_numbers<[1], [0], [0], [1], [0, 0, 1, 1], [], []>} : vector<2x16xf32>, vector<16x32xf32>, vector<2x32xf32> -> vector<2x32xf32>
    %89 = arith.addf %83, %88 : vector<2x32xf32>
    %90 = vector.extract_strided_slice %72 {offsets = [0, 3, 0], sizes = [2, 1, 16], strides = [1, 1, 1]} : vector<2x8x16xf32> to vector<2x1x16xf32>
    %91 = vector.shape_cast %90 : vector<2x1x16xf32> to vector<2x16xf32>
    %c3 = arith.constant 3 : index
    %c0_74 = arith.constant 0 : index
    %c0_75 = arith.constant 0 : index
    %92 = vector.load %arg5[%c3, %c0_74, %c0_75] : memref<8x16x32xf32, #tpu.memory_space<vmem>>, vector<1x16x32xf32>
    %93 = vector.shape_cast %92 : vector<1x16x32xf32> to vector<16x32xf32>
    %cst_76 = arith.constant dense<0.000000e+00> : vector<2x32xf32>
    %94 = tpu.matmul %91, %93, %cst_76 {dimension_numbers = #tpu.dot_dimension_numbers<[1], [0], [0], [1], [0, 0, 1, 1], [], []>} : vector<2x16xf32>, vector<16x32xf32>, vector<2x32xf32> -> vector<2x32xf32>
    %95 = arith.addf %89, %94 : vector<2x32xf32>
    %96 = vector.extract_strided_slice %72 {offsets = [0, 4, 0], sizes = [2, 1, 16], strides = [1, 1, 1]} : vector<2x8x16xf32> to vector<2x1x16xf32>
    %97 = vector.shape_cast %96 : vector<2x1x16xf32> to vector<2x16xf32>
    %c4 = arith.constant 4 : index
    %c0_77 = arith.constant 0 : index
    %c0_78 = arith.constant 0 : index
    %98 = vector.load %arg5[%c4, %c0_77, %c0_78] : memref<8x16x32xf32, #tpu.memory_space<vmem>>, vector<1x16x32xf32>
    %99 = vector.shape_cast %98 : vector<1x16x32xf32> to vector<16x32xf32>
    %cst_79 = arith.constant dense<0.000000e+00> : vector<2x32xf32>
    %100 = tpu.matmul %97, %99, %cst_79 {dimension_numbers = #tpu.dot_dimension_numbers<[1], [0], [0], [1], [0, 0, 1, 1], [], []>} : vector<2x16xf32>, vector<16x32xf32>, vector<2x32xf32> -> vector<2x32xf32>
    %101 = arith.addf %95, %100 : vector<2x32xf32>
    %102 = vector.extract_strided_slice %72 {offsets = [0, 5, 0], sizes = [2, 1, 16], strides = [1, 1, 1]} : vector<2x8x16xf32> to vector<2x1x16xf32>
    %103 = vector.shape_cast %102 : vector<2x1x16xf32> to vector<2x16xf32>
    %c5 = arith.constant 5 : index
    %c0_80 = arith.constant 0 : index
    %c0_81 = arith.constant 0 : index
    %104 = vector.load %arg5[%c5, %c0_80, %c0_81] : memref<8x16x32xf32, #tpu.memory_space<vmem>>, vector<1x16x32xf32>
    %105 = vector.shape_cast %104 : vector<1x16x32xf32> to vector<16x32xf32>
    %cst_82 = arith.constant dense<0.000000e+00> : vector<2x32xf32>
    %106 = tpu.matmul %103, %105, %cst_82 {dimension_numbers = #tpu.dot_dimension_numbers<[1], [0], [0], [1], [0, 0, 1, 1], [], []>} : vector<2x16xf32>, vector<16x32xf32>, vector<2x32xf32> -> vector<2x32xf32>
    %107 = arith.addf %101, %106 : vector<2x32xf32>
    %108 = vector.extract_strided_slice %72 {offsets = [0, 6, 0], sizes = [2, 1, 16], strides = [1, 1, 1]} : vector<2x8x16xf32> to vector<2x1x16xf32>
    %109 = vector.shape_cast %108 : vector<2x1x16xf32> to vector<2x16xf32>
    %c6 = arith.constant 6 : index
    %c0_83 = arith.constant 0 : index
    %c0_84 = arith.constant 0 : index
    %110 = vector.load %arg5[%c6, %c0_83, %c0_84] : memref<8x16x32xf32, #tpu.memory_space<vmem>>, vector<1x16x32xf32>
    %111 = vector.shape_cast %110 : vector<1x16x32xf32> to vector<16x32xf32>
    %cst_85 = arith.constant dense<0.000000e+00> : vector<2x32xf32>
    %112 = tpu.matmul %109, %111, %cst_85 {dimension_numbers = #tpu.dot_dimension_numbers<[1], [0], [0], [1], [0, 0, 1, 1], [], []>} : vector<2x16xf32>, vector<16x32xf32>, vector<2x32xf32> -> vector<2x32xf32>
    %113 = arith.addf %107, %112 : vector<2x32xf32>
    %114 = vector.extract_strided_slice %72 {offsets = [0, 7, 0], sizes = [2, 1, 16], strides = [1, 1, 1]} : vector<2x8x16xf32> to vector<2x1x16xf32>
    %115 = vector.shape_cast %114 : vector<2x1x16xf32> to vector<2x16xf32>
    %c7 = arith.constant 7 : index
    %c0_86 = arith.constant 0 : index
    %c0_87 = arith.constant 0 : index
    %116 = vector.load %arg5[%c7, %c0_86, %c0_87] : memref<8x16x32xf32, #tpu.memory_space<vmem>>, vector<1x16x32xf32>
    %117 = vector.shape_cast %116 : vector<1x16x32xf32> to vector<16x32xf32>
    %cst_88 = arith.constant dense<0.000000e+00> : vector<2x32xf32>
    %118 = tpu.matmul %115, %117, %cst_88 {dimension_numbers = #tpu.dot_dimension_numbers<[1], [0], [0], [1], [0, 0, 1, 1], [], []>} : vector<2x16xf32>, vector<16x32xf32>, vector<2x32xf32> -> vector<2x32xf32>
    %119 = arith.addf %113, %118 : vector<2x32xf32>
    %c0_89 = arith.constant 0 : index
    %c0_90 = arith.constant 0 : index
    %120 = vector.load %arg6[%c0_89, %c0_90] : memref<1x32xf32, #tpu.memory_space<vmem>>, vector<1x32xf32>
    %121 = vector.broadcast %120 : vector<1x32xf32> to vector<2x32xf32>
    %122 = arith.addf %119, %121 : vector<2x32xf32>
    %c0_91 = arith.constant 0 : index
    %c0_92 = arith.constant 0 : index
    %123 = vector.load %arg7[%c0_91, %c0_92] : memref<2x32xf32, #tpu.memory_space<vmem>>, vector<2x32xf32>
    tpu.vector_store %arg7[%c0_91, %c0_92], %122 {strides = array<i32>} : memref<2x32xf32, #tpu.memory_space<vmem>>, vector<2x32xf32>,
    return
  }
}

</mosaic_0001>

<llo_original>
// kernel: tpu_custom_call.1
$region0: #{tpu_custom_call.1}
  #allocation0 [shape = 'u32[]', space=smem, size = 0x4, offset = 0x4, fixed_abs, tag = 'smem constant byte address 0x4 - core index']
  #allocation1 [shape = 'u32[72,128]{1,0:T(1,128)}', space=vmem, size = 0x9000, scoped, tag = 'internal scratch']
  #allocation2 [shape = 'f32[2,34,1]{2,1,0:T(8,128)}', space=vmem, size = 0xa000, scoped, tag = 'scratch operand']
  #allocation3 [shape = 'f32[2,18,8]{2,1,0:T(8,128)}', space=vmem, size = 0x6000, scoped, tag = 'scratch operand']
  %s0 = inlined_call_operand.vmem [shape: f32[2,32,1], index: 0, kind: input, shape index: {}]
  %s1 = inlined_call_operand.vmem [shape: f32[3,1,8], index: 1, kind: input, shape index: {}]
  %s2 = inlined_call_operand.vmem [shape: f32[1,8], index: 2, kind: input, shape index: {}]
  %s3 = inlined_call_operand.vmem [shape: f32[3,8,16], index: 3, kind: input, shape index: {}]
  %s4 = inlined_call_operand.vmem [shape: f32[1,16], index: 4, kind: input, shape index: {}]
  %s5 = inlined_call_operand.hbm [shape: f32[8,16,32], index: 5, kind: input, shape index: {}]
  %s6 = inlined_call_operand.vmem [shape: f32[1,32], index: 6, kind: input, shape index: {}]
  %s7 = inlined_call_operand.hbm [shape: f32[2,32], index: 7, kind: output, shape index: {}]
  %s8 = sld [smem:[#allocation0]]
  $region42: #{tpu_custom_call.1} parent=0
    _
  %s10 = ssub.s32 1, %s8
  %s11 = scalar_select 0, %s10, %s8
  $region1: #{tpu_custom_call.1} parent=0
    #allocation4 [shape = 'u8[65536]{0}', space=vmem, size = 0x10000, scoped, tag = 'input window, operand 5, single buffered']
    #allocation5 [shape = 's32[1]{0}', space=sflag, size = 0x4, scoped, tag = 'scoped memory for tpu_custom_call.1']
    #allocation6 [shape = 's32[1]{0}', space=sflag, size = 0x4, scoped, tag = 'scoped memory for tpu_custom_call.1']
    #allocation7 [shape = 'u8[1024]{0}', space=vmem, size = 0x400, scoped, tag = 'output window, operand 0, single buffered']
    %12 = vsyncpa [#allocation5], 0
    %13 = vsyncpa [#allocation6], 0
    // Predicated region
    $region2: #{tpu_custom_call.1} parent=1 // pred_check
      _
    $region3: #{tpu_custom_call.1} parent=1 // pred_check_branch
      %15 = sbr.rel (0) target = $region5
    $region4: #{tpu_custom_call.1} parent=1 // pred_region
      _
    $region5: #{tpu_custom_call.1} parent=1 // pred_fallthru
      _
    // Predicated region
    $region6: #{tpu_custom_call.1} parent=1 // pred_check
      _
    $region7: #{tpu_custom_call.1} parent=1 // pred_check_branch
      %17 = sbr.rel (0) target = $region9
    $region8: #{tpu_custom_call.1} parent=1 // pred_region
      _
    $region9: #{tpu_custom_call.1} parent=1 // pred_fallthru
      _
    // Predicated region
    $region10: #{tpu_custom_call.1} parent=1 // pred_check
      _
    $region11: #{tpu_custom_call.1} parent=1 // pred_check_branch
      %19 = sbr.rel (0) target = $region13
    $region12: #{tpu_custom_call.1} parent=1 // pred_region
      _
    $region13: #{tpu_custom_call.1} parent=1 // pred_fallthru
      _
    // Predicated region
    $region14: #{tpu_custom_call.1} parent=1 // pred_check
      _
    $region15: #{tpu_custom_call.1} parent=1 // pred_check_branch
      %21 = sbr.rel (0) target = $region17
    $region16: #{tpu_custom_call.1} parent=1 // pred_region
      _
    $region17: #{tpu_custom_call.1} parent=1 // pred_fallthru
      _
    // Predicated region
    $region18: #{tpu_custom_call.1} parent=1 // pred_check
      _
    $region19: #{tpu_custom_call.1} parent=1 // pred_check_branch
      %23 = sbr.rel (0) target = $region21
    $region20: #{tpu_custom_call.1} parent=1 // pred_region
      _
    $region21: #{tpu_custom_call.1} parent=1 // pred_fallthru
      _
    // Predicated region
    $region22: #{tpu_custom_call.1} parent=1 // pred_check
      _
    $region23: #{tpu_custom_call.1} parent=1 // pred_check_branch
      %25 = sbr.rel (0) target = $region25
    $region24: #{tpu_custom_call.1} parent=1 // pred_region
      %27 = vsyncadd [#allocation5], 0
      %s28 = sshll.u32 %s5, 4
      %s29 = int_to_ptr.hbm [resolvable:$true] %s28
      %s30 = sshll.u32 [#allocation4], 4
      %s31 = int_to_ptr.vmem [resolvable:$true] %s30
      %36 = dma.hbm_to_vmem [thread:$0]  %s29, 2048, %s31, [#allocation5], 128, 128, 8
    $region25: #{tpu_custom_call.1} parent=1 // pred_fallthru
      _
    // Predicated region
    $region26: #{tpu_custom_call.1} parent=1 // pred_check
      _
    $region27: #{tpu_custom_call.1} parent=1 // pred_check_branch
      %38 = sbr.rel (0) target = $region29
    $region28: #{tpu_custom_call.1} parent=1 // pred_region
      _
    $region29: #{tpu_custom_call.1} parent=1 // pred_fallthru
      _
    // Predicated region
    $region30: #{tpu_custom_call.1} parent=1 // pred_check
      _
    $region31: #{tpu_custom_call.1} parent=1 // pred_check_branch
      %40 = sbr.rel (0) target = $region33
    $region32: #{tpu_custom_call.1} parent=1 // pred_region
      %42 = dma.done [#allocation5], 2048
    $region33: #{tpu_custom_call.1} parent=1 // pred_fallthru
      _
    %v43 = vld [vmem:[%s0] sm:$0xff]
    %v44 = vld [vmem:[%s0 + $0x8] sm:$0xff]
    %v45 = vld [vmem:[%s0 + $0x10] sm:$0xff]
    %v46 = vld [vmem:[%s0 + $0x18] sm:$0xff]
    %v47 = vld [vmem:[%s0 + $0x20] sm:$0xff]
    %v48 = vld [vmem:[%s0 + $0x28] sm:$0xff]
    %v49 = vld [vmem:[%s0 + $0x30] sm:$0xff]
    %v50 = vld [vmem:[%s0 + $0x38] sm:$0xff]
    %vm51 = vcmask 0
    %52 = vst.msk [vmem:[#allocation2] sm:$0x1] %vm51, 0.0
    %53 = vst.msk [vmem:[#allocation2 + $0x28] sm:$0x1] %vm51, 0.0
    %54 = vst.msk [vmem:[#allocation2 + $0x21] sm:$0x1] %vm51, 0.0
    %55 = vst.msk [vmem:[#allocation2 + $0x49] sm:$0x1] %vm51, 0.0
    %vm56 = vcmask 7168
    %57 = vst.msk [vmem:[#allocation2 + $0x1] sm:$0xff] %vm56, %v43
    %58 = vst.msk [vmem:[#allocation2 + $0x9] sm:$0xff] %vm56, %v44
    %59 = vst.msk [vmem:[#allocation2 + $0x11] sm:$0xff] %vm56, %v45
    %60 = vst.msk [vmem:[#allocation2 + $0x19] sm:$0xff] %vm56, %v46
    %61 = vst.msk [vmem:[#allocation2 + $0x29] sm:$0xff] %vm56, %v47
    %62 = vst.msk [vmem:[#allocation2 + $0x31] sm:$0xff] %vm56, %v48
    %63 = vst.msk [vmem:[#allocation2 + $0x39] sm:$0xff] %vm56, %v49
    %64 = vst.msk [vmem:[#allocation2 + $0x41] sm:$0xff] %vm56, %v50
    %v65 = vld [vmem:[#allocation2] sm:$0xff]
    %v66 = vld [vmem:[#allocation2 + $0x8] sm:$0xff]
    %v67 = vld [vmem:[#allocation2 + $0x10] sm:$0xff]
    %v68 = vld [vmem:[#allocation2 + $0x18] sm:$0xff]
    %v69 = vld [vmem:[#allocation2 + $0x28] sm:$0xff]
    %v70 = vld [vmem:[#allocation2 + $0x30] sm:$0xff]
    %v71 = vld [vmem:[#allocation2 + $0x38] sm:$0xff]
    %v72 = vld [vmem:[#allocation2 + $0x40] sm:$0xff]
    %v73 = vld [vmem:[%s1] sm:$0x1]
    %75 = vset.pattern.permute.xlu0 0
    %76 = vperm.xlu0 %75, %v65
    %v77 = vpop.permute.xlu0 %76
    %80 = vset.pattern.permute.xlu0 0
    %81 = vperm.xlu0 %80, %v66
    %v82 = vpop.permute.xlu0 %81
    %85 = vset.pattern.permute.xlu0 0
    %86 = vperm.xlu0 %85, %v67
    %v87 = vpop.permute.xlu0 %86
    %90 = vset.pattern.permute.xlu0 0
    %91 = vperm.xlu0 %90, %v68
    %v92 = vpop.permute.xlu0 %91
    %95 = vset.pattern.permute.xlu0 0
    %96 = vperm.xlu0 %95, %v69
    %v97 = vpop.permute.xlu0 %96
    %100 = vset.pattern.permute.xlu0 0
    %101 = vperm.xlu0 %100, %v70
    %v102 = vpop.permute.xlu0 %101
    %105 = vset.pattern.permute.xlu0 0
    %106 = vperm.xlu0 %105, %v71
    %v107 = vpop.permute.xlu0 %106
    %110 = vset.pattern.permute.xlu0 0
    %111 = vperm.xlu0 %110, %v72
    %v112 = vpop.permute.xlu0 %111
    %v115 = vperm.slane %v73, 0
    %v117 = vmul.f32 %v77, %v115
    %v118 = vmul.f32 %v82, %v115
    %v119 = vmul.f32 %v87, %v115
    %v120 = vmul.f32 %v92, %v115
    %v121 = vmul.f32 %v97, %v115
    %v122 = vmul.f32 %v102, %v115
    %v123 = vmul.f32 %v107, %v115
    %v124 = vmul.f32 %v112, %v115
    %v125 = vld [vmem:[#allocation2 + $0x1] sm:$0xff]
    %v126 = vld [vmem:[#allocation2 + $0x9] sm:$0xff]
    %v127 = vld [vmem:[#allocation2 + $0x11] sm:$0xff]
    %v128 = vld [vmem:[#allocation2 + $0x19] sm:$0xff]
    %v129 = vld [vmem:[#allocation2 + $0x29] sm:$0xff]
    %v130 = vld [vmem:[#allocation2 + $0x31] sm:$0xff]
    %v131 = vld [vmem:[#allocation2 + $0x39] sm:$0xff]
    %v132 = vld [vmem:[#allocation2 + $0x41] sm:$0xff]
    %s133 = scalar_lea.vmem %s1, 1
    %v134 = vld [vmem:[%s133] sm:$0x1]
    %136 = vset.pattern.permute.xlu0 0
    %137 = vperm.xlu0 %136, %v125
    %v138 = vpop.permute.xlu0 %137
    %141 = vset.pattern.permute.xlu0 0
    %142 = vperm.xlu0 %141, %v126
    %v143 = vpop.permute.xlu0 %142
    %146 = vset.pattern.permute.xlu0 0
    %147 = vperm.xlu0 %146, %v127
    %v148 = vpop.permute.xlu0 %147
    %151 = vset.pattern.permute.xlu0 0
    %152 = vperm.xlu0 %151, %v128
    %v153 = vpop.permute.xlu0 %152
    %156 = vset.pattern.permute.xlu0 0
    %157 = vperm.xlu0 %156, %v129
    %v158 = vpop.permute.xlu0 %157
    %161 = vset.pattern.permute.xlu0 0
    %162 = vperm.xlu0 %161, %v130
    %v163 = vpop.permute.xlu0 %162
    %166 = vset.pattern.permute.xlu0 0
    %167 = vperm.xlu0 %166, %v131
    %v168 = vpop.permute.xlu0 %167
    %171 = vset.pattern.permute.xlu0 0
    %172 = vperm.xlu0 %171, %v132
    %v173 = vpop.permute.xlu0 %172
    %v176 = vperm.slane %v134, 0
    %v178 = vmul.f32 %v138, %v176
    %v179 = vmul.f32 %v143, %v176
    %v180 = vmul.f32 %v148, %v176
    %v181 = vmul.f32 %v153, %v176
    %v182 = vmul.f32 %v158, %v176
    %v183 = vmul.f32 %v163, %v176
    %v184 = vmul.f32 %v168, %v176
    %v185 = vmul.f32 %v173, %v176
    %v186 = vadd.f32 %v117, %v178
    %v187 = vadd.f32 %v118, %v179
    %v188 = vadd.f32 %v119, %v180
    %v189 = vadd.f32 %v120, %v181
    %v190 = vadd.f32 %v121, %v182
    %v191 = vadd.f32 %v122, %v183
    %v192 = vadd.f32 %v123, %v184
    %v193 = vadd.f32 %v124, %v185
    %v194 = vld [vmem:[#allocation2 + $0x2] sm:$0xff]
    %v195 = vld [vmem:[#allocation2 + $0xa] sm:$0xff]
    %v196 = vld [vmem:[#allocation2 + $0x12] sm:$0xff]
    %v197 = vld [vmem:[#allocation2 + $0x1a] sm:$0xff]
    %v198 = vld [vmem:[#allocation2 + $0x2a] sm:$0xff]
    %v199 = vld [vmem:[#allocation2 + $0x32] sm:$0xff]
    %v200 = vld [vmem:[#allocation2 + $0x3a] sm:$0xff]
    %v201 = vld [vmem:[#allocation2 + $0x42] sm:$0xff]
    %s202 = scalar_lea.vmem %s1, 2
    %v203 = vld [vmem:[%s202] sm:$0x1]
    %205 = vset.pattern.permute.xlu0 0
    %206 = vperm.xlu0 %205, %v194
    %v207 = vpop.permute.xlu0 %206
    %210 = vset.pattern.permute.xlu0 0
    %211 = vperm.xlu0 %210, %v195
    %v212 = vpop.permute.xlu0 %211
    %215 = vset.pattern.permute.xlu0 0
    %216 = vperm.xlu0 %215, %v196
    %v217 = vpop.permute.xlu0 %216
    %220 = vset.pattern.permute.xlu0 0
    %221 = vperm.xlu0 %220, %v197
    %v222 = vpop.permute.xlu0 %221
    %225 = vset.pattern.permute.xlu0 0
    %226 = vperm.xlu0 %225, %v198
    %v227 = vpop.permute.xlu0 %226
    %230 = vset.pattern.permute.xlu0 0
    %231 = vperm.xlu0 %230, %v199
    %v232 = vpop.permute.xlu0 %231
    %235 = vset.pattern.permute.xlu0 0
    %236 = vperm.xlu0 %235, %v200
    %v237 = vpop.permute.xlu0 %236
    %240 = vset.pattern.permute.xlu0 0
    %241 = vperm.xlu0 %240, %v201
    %v242 = vpop.permute.xlu0 %241
    %v245 = vperm.slane %v203, 0
    %v247 = vmul.f32 %v207, %v245
    %v248 = vmul.f32 %v212, %v245
    %v249 = vmul.f32 %v217, %v245
    %v250 = vmul.f32 %v222, %v245
    %v251 = vmul.f32 %v227, %v245
    %v252 = vmul.f32 %v232, %v245
    %v253 = vmul.f32 %v237, %v245
    %v254 = vmul.f32 %v242, %v245
    %v255 = vadd.f32 %v186, %v247
    %v256 = vadd.f32 %v187, %v248
    %v257 = vadd.f32 %v188, %v249
    %v258 = vadd.f32 %v189, %v250
    %v259 = vadd.f32 %v190, %v251
    %v260 = vadd.f32 %v191, %v252
    %v261 = vadd.f32 %v192, %v253
    %v262 = vadd.f32 %v193, %v254
    %v263 = vld [vmem:[%s2] sm:$0x1]
    %v265 = vperm.slane %v263, 0
    %v267 = vadd.f32 %v255, %v265
    %v268 = vadd.f32 %v256, %v265
    %v269 = vadd.f32 %v257, %v265
    %v270 = vadd.f32 %v258, %v265
    %v271 = vadd.f32 %v259, %v265
    %v272 = vadd.f32 %v260, %v265
    %v273 = vadd.f32 %v261, %v265
    %v274 = vadd.f32 %v262, %v265
    %v275 = vmax.f32 %v267, 0.0
    %v276 = vmax.f32 %v268, 0.0
    %v277 = vmax.f32 %v269, 0.0
    %v278 = vmax.f32 %v270, 0.0
    %v279 = vmax.f32 %v271, 0.0
    %v280 = vmax.f32 %v272, 0.0
    %v281 = vmax.f32 %v273, 0.0
    %v282 = vmax.f32 %v274, 0.0
    %v291 = vrot.slane %v275, 2
    %v292 = vrot.slane %v275, 4
    %v293 = vrot.slane %v275, 6
    %v294 = vrot.slane %v276, 2
    %v295 = vrot.slane %v276, 4
    %v296 = vrot.slane %v276, 6
    %v297 = vrot.slane %v277, 2
    %v298 = vrot.slane %v277, 4
    %v299 = vrot.slane %v277, 6
    %v300 = vrot.slane %v278, 2
    %v301 = vrot.slane %v278, 4
    %v302 = vrot.slane %v278, 6
    %v303 = vrot.slane %v279, 2
    %v304 = vrot.slane %v279, 4
    %v305 = vrot.slane %v279, 6
    %v306 = vrot.slane %v280, 2
    %v307 = vrot.slane %v280, 4
    %v308 = vrot.slane %v280, 6
    %v309 = vrot.slane %v281, 2
    %v310 = vrot.slane %v281, 4
    %v311 = vrot.slane %v281, 6
    %v312 = vrot.slane %v282, 2
    %v313 = vrot.slane %v282, 4
    %v314 = vrot.slane %v282, 6
    %v339 = vrot.slane %v275, 7
    %v340 = vrot.slane %v339, 2
    %v341 = vrot.slane %v291, 7
    %v342 = vrot.slane %v341, 2
    %v343 = vrot.slane %v292, 7
    %v344 = vrot.slane %v343, 2
    %v345 = vrot.slane %v293, 7
    %v346 = vrot.slane %v345, 2
    %v347 = vrot.slane %v276, 7
    %v348 = vrot.slane %v347, 2
    %v349 = vrot.slane %v294, 7
    %v350 = vrot.slane %v349, 2
    %v351 = vrot.slane %v295, 7
    %v352 = vrot.slane %v351, 2
    %v353 = vrot.slane %v296, 7
    %v354 = vrot.slane %v353, 2
    %v355 = vrot.slane %v277, 7
    %v356 = vrot.slane %v355, 2
    %v357 = vrot.slane %v297, 7
    %v358 = vrot.slane %v357, 2
    %v359 = vrot.slane %v298, 7
    %v360 = vrot.slane %v359, 2
    %v361 = vrot.slane %v299, 7
    %v362 = vrot.slane %v361, 2
    %v363 = vrot.slane %v278, 7
    %v364 = vrot.slane %v363, 2
    %v365 = vrot.slane %v300, 7
    %v366 = vrot.slane %v365, 2
    %v367 = vrot.slane %v301, 7
    %v368 = vrot.slane %v367, 2
    %v369 = vrot.slane %v302, 7
    %v370 = vrot.slane %v369, 2
    %v371 = vrot.slane %v279, 7
    %v372 = vrot.slane %v371, 2
    %v373 = vrot.slane %v303, 7
    %v374 = vrot.slane %v373, 2
    %v375 = vrot.slane %v304, 7
    %v376 = vrot.slane %v375, 2
    %v377 = vrot.slane %v305, 7
    %v378 = vrot.slane %v377, 2
    %v379 = vrot.slane %v280, 7
    %v380 = vrot.slane %v379, 2
    %v381 = vrot.slane %v306, 7
    %v382 = vrot.slane %v381, 2
    %v383 = vrot.slane %v307, 7
    %v384 = vrot.slane %v383, 2
    %v385 = vrot.slane %v308, 7
    %v386 = vrot.slane %v385, 2
    %v387 = vrot.slane %v281, 7
    %v388 = vrot.slane %v387, 2
    %v389 = vrot.slane %v309, 7
    %v390 = vrot.slane %v389, 2
    %v391 = vrot.slane %v310, 7
    %v392 = vrot.slane %v391, 2
    %v393 = vrot.slane %v311, 7
    %v394 = vrot.slane %v393, 2
    %v395 = vrot.slane %v282, 7
    %v396 = vrot.slane %v395, 2
    %v397 = vrot.slane %v312, 7
    %v398 = vrot.slane %v397, 2
    %v399 = vrot.slane %v313, 7
    %v400 = vrot.slane %v399, 2
    %v401 = vrot.slane %v314, 7
    %v402 = vrot.slane %v401, 2
    %v435 = vmax.f32 %v275, %v340
    %v436 = vmax.f32 %v291, %v342
    %v437 = vmax.f32 %v292, %v344
    %v438 = vmax.f32 %v293, %v346
    %v439 = vmax.f32 %v276, %v348
    %v440 = vmax.f32 %v294, %v350
    %v441 = vmax.f32 %v295, %v352
    %v442 = vmax.f32 %v296, %v354
    %v443 = vmax.f32 %v277, %v356
    %v444 = vmax.f32 %v297, %v358
    %v445 = vmax.f32 %v298, %v360
    %v446 = vmax.f32 %v299, %v362
    %v447 = vmax.f32 %v278, %v364
    %v448 = vmax.f32 %v300, %v366
    %v449 = vmax.f32 %v301, %v368
    %v450 = vmax.f32 %v302, %v370
    %v451 = vmax.f32 %v279, %v372
    %v452 = vmax.f32 %v303, %v374
    %v453 = vmax.f32 %v304, %v376
    %v454 = vmax.f32 %v305, %v378
    %v455 = vmax.f32 %v280, %v380
    %v456 = vmax.f32 %v306, %v382
    %v457 = vmax.f32 %v307, %v384
    %v458 = vmax.f32 %v308, %v386
    %v459 = vmax.f32 %v281, %v388
    %v460 = vmax.f32 %v309, %v390
    %v461 = vmax.f32 %v310, %v392
    %v462 = vmax.f32 %v311, %v394
    %v463 = vmax.f32 %v282, %v396
    %v464 = vmax.f32 %v312, %v398
    %v465 = vmax.f32 %v313, %v400
    %v466 = vmax.f32 %v314, %v402
    %vm467 = vcmask 57344
    %468 = vst.msk [vmem:[#allocation3] sm:$0x1] %vm467, 0.0
    %469 = vst.msk [vmem:[#allocation3 + $0x18] sm:$0x1] %vm467, 0.0
    %470 = vst.msk [vmem:[#allocation3 + $0x11] sm:$0x1] %vm467, 0.0
    %471 = vst.msk [vmem:[#allocation3 + $0x29] sm:$0x1] %vm467, 0.0
    %v504 = vperm.slane %v435, 0
    %v505 = vperm.slane %v436, 0
    %v506 = vperm.slane %v437, 0
    %v507 = vperm.slane %v438, 0
    %v508 = vperm.slane %v439, 0
    %v509 = vperm.slane %v440, 0
    %v510 = vperm.slane %v441, 0
    %v511 = vperm.slane %v442, 0
    %v512 = vperm.slane %v443, 0
    %v513 = vperm.slane %v444, 0
    %v514 = vperm.slane %v445, 0
    %v515 = vperm.slane %v446, 0
    %v516 = vperm.slane %v447, 0
    %v517 = vperm.slane %v448, 0
    %v518 = vperm.slane %v449, 0
    %v519 = vperm.slane %v450, 0
    %v520 = vperm.slane %v451, 0
    %v521 = vperm.slane %v452, 0
    %v522 = vperm.slane %v453, 0
    %v523 = vperm.slane %v454, 0
    %v524 = vperm.slane %v455, 0
    %v525 = vperm.slane %v456, 0
    %v526 = vperm.slane %v457, 0
    %v527 = vperm.slane %v458, 0
    %v528 = vperm.slane %v459, 0
    %v529 = vperm.slane %v460, 0
    %v530 = vperm.slane %v461, 0
    %v531 = vperm.slane %v462, 0
    %v532 = vperm.slane %v463, 0
    %v533 = vperm.slane %v464, 0
    %v534 = vperm.slane %v465, 0
    %v535 = vperm.slane %v466, 0
    %vm536 = vcmask 1041409
    %v537 = vsel %vm536, %v505, %v504
    %vm538 = vcmask 1042434
    %v539 = vsel %vm538, %v506, %v537
    %vm540 = vcmask 1043459
    %v541 = vsel %vm540, %v507, %v539
    %vm542 = vcmask 1044484
    %v543 = vsel %vm542, %v508, %v541
    %vm544 = vcmask 1045509
    %v545 = vsel %vm544, %v509, %v543
    %vm546 = vcmask 1046534
    %v547 = vsel %vm546, %v510, %v545
    %vm548 = vcmask 1047559
    %v549 = vsel %vm548, %v511, %v547
    %v550 = vsel %vm536, %v513, %v512
    %v551 = vsel %vm538, %v514, %v550
    %v552 = vsel %vm540, %v515, %v551
    %v553 = vsel %vm542, %v516, %v552
    %v554 = vsel %vm544, %v517, %v553
    %v555 = vsel %vm546, %v518, %v554
    %v556 = vsel %vm548, %v519, %v555
    %v557 = vsel %vm536, %v521, %v520
    %v558 = vsel %vm538, %v522, %v557
    %v559 = vsel %vm540, %v523, %v558
    %v560 = vsel %vm542, %v524, %v559
    %v561 = vsel %vm544, %v525, %v560
    %v562 = vsel %vm546, %v526, %v561
    %v563 = vsel %vm548, %v527, %v562
    %v564 = vsel %vm536, %v529, %v528
    %v565 = vsel %vm538, %v530, %v564
    %v566 = vsel %vm540, %v531, %v565
    %v567 = vsel %vm542, %v532, %v566
    %v568 = vsel %vm544, %v533, %v567
    %v569 = vsel %vm546, %v534, %v568
    %v570 = vsel %vm548, %v535, %v569
    %vm575 = vcmask 64512
    %576 = vst.msk [vmem:[#allocation3 + $0x1] sm:$0xff] %vm575, %v549
    %577 = vst.msk [vmem:[#allocation3 + $0x9] sm:$0xff] %vm575, %v556
    %578 = vst.msk [vmem:[#allocation3 + $0x19] sm:$0xff] %vm575, %v563
    %579 = vst.msk [vmem:[#allocation3 + $0x21] sm:$0xff] %vm575, %v570
    %v580 = vld [vmem:[#allocation3] sm:$0xff]
    %v581 = vld [vmem:[#allocation3 + $0x8] sm:$0xff]
    %v582 = vld [vmem:[#allocation3 + $0x18] sm:$0xff]
    %v583 = vld [vmem:[#allocation3 + $0x20] sm:$0xff]
    %v584 = vld [vmem:[%s3] sm:$0xff]
    %v585 = vld [vmem:[#allocation3 + $0x1] sm:$0xff]
    %v586 = vld [vmem:[#allocation3 + $0x9] sm:$0xff]
    %v587 = vld [vmem:[#allocation3 + $0x19] sm:$0xff]
    %v588 = vld [vmem:[#allocation3 + $0x21] sm:$0xff]
    %s589 = scalar_lea.vmem %s3, 8
    %v590 = vld [vmem:[%s589] sm:$0xff]
    %v592 = vsel %vm575, %v585, 0
    %v595 = vsel %vm575, %v586, 0
    %v598 = vsel %vm575, %v587, 0
    %v601 = vsel %vm575, %v588, 0
    %603 = vmatpush.msra.mxu0 0.0
    %604 = vmatpush.msra.mxu0 0.0
    %605 = vmatpush.msra.mxu0 0.0
    %606 = vmatpush.msra.mxu0 0.0
    %607 = vmatpush.msra.mxu0 0.0
    %608 = vmatpush.msra.mxu0 0.0
    %609 = vmatpush.msra.mxu0 0.0
    %610 = vmatpush.msra.mxu0 0.0
    %611 = vmatpush.msra.mxu0 0.0
    %612 = vmatpush.msra.mxu0 0.0
    %613 = vmatpush.msra.mxu0 0.0
    %614 = vmatpush.msra.mxu0 0.0
    %615 = vmatpush.msra.mxu0 0.0
    %616 = vmatpush.msra.mxu0 0.0
    %617 = vmatpush.msra.mxu0 0.0
    %618 = vmatpush.msra.mxu0 %v590
    %619 = vmatmul.f32.gmra.mxu0 %v592
    %v620 = vpop.f32.mrf.mxu0
    %v621 = vadd.f32 0.0, %v620
    %622 = vmatmul.f32.gmra.mxu0 %v595
    %v623 = vpop.f32.mrf.mxu0
    %v624 = vadd.f32 0.0, %v623
    %625 = vmatmul.f32.gmra.mxu0 %v598
    %v626 = vpop.f32.mrf.mxu0
    %v627 = vadd.f32 0.0, %v626
    %628 = vmatmul.f32.gmra.mxu0 %v601
    %v629 = vpop.f32.mrf.mxu0
    %v630 = vadd.f32 0.0, %v629
    %631 = vdwg.mxu0
    %v633 = vsel %vm575, %v580, 0
    %v636 = vsel %vm575, %v581, 0
    %v639 = vsel %vm575, %v582, 0
    %v642 = vsel %vm575, %v583, 0
    %644 = vmatpush.msra.mxu0 0.0
    %645 = vmatpush.msra.mxu0 0.0
    %646 = vmatpush.msra.mxu0 0.0
    %647 = vmatpush.msra.mxu0 0.0
    %648 = vmatpush.msra.mxu0 0.0
    %649 = vmatpush.msra.mxu0 0.0
    %650 = vmatpush.msra.mxu0 0.0
    %651 = vmatpush.msra.mxu0 0.0
    %652 = vmatpush.msra.mxu0 0.0
    %653 = vmatpush.msra.mxu0 0.0
    %654 = vmatpush.msra.mxu0 0.0
    %655 = vmatpush.msra.mxu0 0.0
    %656 = vmatpush.msra.mxu0 0.0
    %657 = vmatpush.msra.mxu0 0.0
    %658 = vmatpush.msra.mxu0 0.0
    %659 = vmatpush.msra.mxu0 %v584
    %660 = vmatmul.f32.gmra.mxu0 %v633
    %v661 = vpop.f32.mrf.mxu0
    %v662 = vadd.f32 %v621, %v661
    %663 = vmatmul.f32.gmra.mxu0 %v636
    %v664 = vpop.f32.mrf.mxu0
    %v665 = vadd.f32 %v624, %v664
    %666 = vmatmul.f32.gmra.mxu0 %v639
    %v667 = vpop.f32.mrf.mxu0
    %v668 = vadd.f32 %v627, %v667
    %669 = vmatmul.f32.gmra.mxu0 %v642
    %v670 = vpop.f32.mrf.mxu0
    %v671 = vadd.f32 %v630, %v670
    %672 = vdwg.mxu0
    %v673 = vld [vmem:[#allocation3 + $0x2] sm:$0xff]
    %v674 = vld [vmem:[#allocation3 + $0xa] sm:$0xff]
    %v675 = vld [vmem:[#allocation3 + $0x1a] sm:$0xff]
    %v676 = vld [vmem:[#allocation3 + $0x22] sm:$0xff]
    %s677 = scalar_lea.vmem %s3, 16
    %v678 = vld [vmem:[%s677] sm:$0xff]
    %v680 = vsel %vm575, %v673, 0
    %v683 = vsel %vm575, %v674, 0
    %v686 = vsel %vm575, %v675, 0
    %v689 = vsel %vm575, %v676, 0
    %691 = vmatpush.msra.mxu0 0.0
    %692 = vmatpush.msra.mxu0 0.0
    %693 = vmatpush.msra.mxu0 0.0
    %694 = vmatpush.msra.mxu0 0.0
    %695 = vmatpush.msra.mxu0 0.0
    %696 = vmatpush.msra.mxu0 0.0
    %697 = vmatpush.msra.mxu0 0.0
    %698 = vmatpush.msra.mxu0 0.0
    %699 = vmatpush.msra.mxu0 0.0
    %700 = vmatpush.msra.mxu0 0.0
    %701 = vmatpush.msra.mxu0 0.0
    %702 = vmatpush.msra.mxu0 0.0
    %703 = vmatpush.msra.mxu0 0.0
    %704 = vmatpush.msra.mxu0 0.0
    %705 = vmatpush.msra.mxu0 0.0
    %706 = vmatpush.msra.mxu0 %v678
    %707 = vmatmul.f32.gmra.mxu0 %v680
    %v708 = vpop.f32.mrf.mxu0
    %v709 = vadd.f32 0.0, %v708
    %710 = vmatmul.f32.gmra.mxu0 %v683
    %v711 = vpop.f32.mrf.mxu0
    %v712 = vadd.f32 0.0, %v711
    %713 = vmatmul.f32.gmra.mxu0 %v686
    %v714 = vpop.f32.mrf.mxu0
    %v715 = vadd.f32 0.0, %v714
    %716 = vmatmul.f32.gmra.mxu0 %v689
    %v717 = vpop.f32.mrf.mxu0
    %v718 = vadd.f32 0.0, %v717
    %719 = vdwg.mxu0
    %v720 = vadd.f32 %v662, %v709
    %v721 = vadd.f32 %v665, %v712
    %v722 = vadd.f32 %v668, %v715
    %v723 = vadd.f32 %v671, %v718
    %v724 = vld [vmem:[%s4] sm:$0x1]
    %v726 = vperm.slane %v724, 0
    %v728 = vadd.f32 %v720, %v726
    %v729 = vadd.f32 %v721, %v726
    %v730 = vadd.f32 %v722, %v726
    %v731 = vadd.f32 %v723, %v726
    %v732 = vmax.f32 %v728, 0.0
    %v733 = vmax.f32 %v729, 0.0
    %v734 = vmax.f32 %v730, 0.0
    %v735 = vmax.f32 %v731, 0.0
    %v740 = vrot.slane %v732, 2
    %v741 = vrot.slane %v732, 4
    %v742 = vrot.slane %v732, 6
    %v743 = vrot.slane %v733, 2
    %v744 = vrot.slane %v733, 4
    %v745 = vrot.slane %v733, 6
    %v746 = vrot.slane %v734, 2
    %v747 = vrot.slane %v734, 4
    %v748 = vrot.slane %v734, 6
    %v749 = vrot.slane %v735, 2
    %v750 = vrot.slane %v735, 4
    %v751 = vrot.slane %v735, 6
    %v764 = vrot.slane %v732, 7
    %v765 = vrot.slane %v764, 2
    %v766 = vrot.slane %v740, 7
    %v767 = vrot.slane %v766, 2
    %v768 = vrot.slane %v741, 7
    %v769 = vrot.slane %v768, 2
    %v770 = vrot.slane %v742, 7
    %v771 = vrot.slane %v770, 2
    %v772 = vrot.slane %v733, 7
    %v773 = vrot.slane %v772, 2
    %v774 = vrot.slane %v743, 7
    %v775 = vrot.slane %v774, 2
    %v776 = vrot.slane %v744, 7
    %v777 = vrot.slane %v776, 2
    %v778 = vrot.slane %v745, 7
    %v779 = vrot.slane %v778, 2
    %v780 = vrot.slane %v734, 7
    %v781 = vrot.slane %v780, 2
    %v782 = vrot.slane %v746, 7
    %v783 = vrot.slane %v782, 2
    %v784 = vrot.slane %v747, 7
    %v785 = vrot.slane %v784, 2
    %v786 = vrot.slane %v748, 7
    %v787 = vrot.slane %v786, 2
    %v788 = vrot.slane %v735, 7
    %v789 = vrot.slane %v788, 2
    %v790 = vrot.slane %v749, 7
    %v791 = vrot.slane %v790, 2
    %v792 = vrot.slane %v750, 7
    %v793 = vrot.slane %v792, 2
    %v794 = vrot.slane %v751, 7
    %v795 = vrot.slane %v794, 2
    %v812 = vmax.f32 %v732, %v765
    %v813 = vmax.f32 %v740, %v767
    %v814 = vmax.f32 %v741, %v769
    %v815 = vmax.f32 %v742, %v771
    %v816 = vmax.f32 %v733, %v773
    %v817 = vmax.f32 %v743, %v775
    %v818 = vmax.f32 %v744, %v777
    %v819 = vmax.f32 %v745, %v779
    %v820 = vmax.f32 %v734, %v781
    %v821 = vmax.f32 %v746, %v783
    %v822 = vmax.f32 %v747, %v785
    %v823 = vmax.f32 %v748, %v787
    %v824 = vmax.f32 %v735, %v789
    %v825 = vmax.f32 %v749, %v791
    %v826 = vmax.f32 %v750, %v793
    %v827 = vmax.f32 %v751, %v795
    %v828 = vld [vmem:[#allocation4] sm:$0xff]
    %v829 = vld [vmem:[#allocation4 + $0x8] sm:$0xff]
    %s830 = scalar_lea.vmem [#allocation4], 16
    %v831 = vld [vmem:[%s830] sm:$0xff]
    %v832 = vld [vmem:[%s830 + $0x8] sm:$0xff]
    %v835 = vperm.slane %v813, 0
    %v836 = vperm.slane %v821, 0
    %v837 = vsel %vm536, %v836, %v835
    %vm838 = vcmask 130048
    %v839 = vsel %vm838, %v837, 0
    %841 = vmatpush.msra.mxu0 0.0
    %842 = vmatpush.msra.mxu0 0.0
    %843 = vmatpush.msra.mxu0 0.0
    %844 = vmatpush.msra.mxu0 0.0
    %845 = vmatpush.msra.mxu0 0.0
    %846 = vmatpush.msra.mxu0 0.0
    %847 = vmatpush.msra.mxu0 0.0
    %848 = vmatpush.msra.mxu0 0.0
    %849 = vmatpush.msra.mxu0 0.0
    %850 = vmatpush.msra.mxu0 0.0
    %851 = vmatpush.msra.mxu0 0.0
    %852 = vmatpush.msra.mxu0 0.0
    %853 = vmatpush.msra.mxu0 0.0
    %854 = vmatpush.msra.mxu0 0.0
    %855 = vmatpush.msra.mxu0 %v832
    %856 = vmatpush.msra.mxu0 %v831
    %857 = vmatmul.f32.gmra.mxu0 %v839
    %v858 = vpop.f32.mrf.mxu0
    %v859 = vadd.f32 0.0, %v858
    %860 = vdwg.mxu0
    %v863 = vperm.slane %v812, 0
    %v864 = vperm.slane %v820, 0
    %v865 = vsel %vm536, %v864, %v863
    %v866 = vsel %vm838, %v865, 0
    %868 = vmatpush.msra.mxu0 0.0
    %869 = vmatpush.msra.mxu0 0.0
    %870 = vmatpush.msra.mxu0 0.0
    %871 = vmatpush.msra.mxu0 0.0
    %872 = vmatpush.msra.mxu0 0.0
    %873 = vmatpush.msra.mxu0 0.0
    %874 = vmatpush.msra.mxu0 0.0
    %875 = vmatpush.msra.mxu0 0.0
    %876 = vmatpush.msra.mxu0 0.0
    %877 = vmatpush.msra.mxu0 0.0
    %878 = vmatpush.msra.mxu0 0.0
    %879 = vmatpush.msra.mxu0 0.0
    %880 = vmatpush.msra.mxu0 0.0
    %881 = vmatpush.msra.mxu0 0.0
    %882 = vmatpush.msra.mxu0 %v829
    %883 = vmatpush.msra.mxu0 %v828
    %884 = vmatmul.f32.gmra.mxu0 %v866
    %v885 = vpop.f32.mrf.mxu0
    %v886 = vadd.f32 %v859, %v885
    %887 = vdwg.mxu0
    %s888 = scalar_lea.vmem [#allocation4], 32
    %v889 = vld [vmem:[%s888] sm:$0xff]
    %v890 = vld [vmem:[%s888 + $0x8] sm:$0xff]
    %v893 = vperm.slane %v814, 0
    %v894 = vperm.slane %v822, 0
    %v895 = vsel %vm536, %v894, %v893
    %v896 = vsel %vm838, %v895, 0
    %898 = vmatpush.msra.mxu0 0.0
    %899 = vmatpush.msra.mxu0 0.0
    %900 = vmatpush.msra.mxu0 0.0
    %901 = vmatpush.msra.mxu0 0.0
    %902 = vmatpush.msra.mxu0 0.0
    %903 = vmatpush.msra.mxu0 0.0
    %904 = vmatpush.msra.mxu0 0.0
    %905 = vmatpush.msra.mxu0 0.0
    %906 = vmatpush.msra.mxu0 0.0
    %907 = vmatpush.msra.mxu0 0.0
    %908 = vmatpush.msra.mxu0 0.0
    %909 = vmatpush.msra.mxu0 0.0
    %910 = vmatpush.msra.mxu0 0.0
    %911 = vmatpush.msra.mxu0 0.0
    %912 = vmatpush.msra.mxu0 %v890
    %913 = vmatpush.msra.mxu0 %v889
    %914 = vmatmul.f32.gmra.mxu0 %v896
    %v915 = vpop.f32.mrf.mxu0
    %v916 = vadd.f32 0.0, %v915
    %917 = vdwg.mxu0
    %v918 = vadd.f32 %v886, %v916
    %s919 = scalar_lea.vmem [#allocation4], 48
    %v920 = vld [vmem:[%s919] sm:$0xff]
    %v921 = vld [vmem:[%s919 + $0x8] sm:$0xff]
    %v924 = vperm.slane %v815, 0
    %v925 = vperm.slane %v823, 0
    %v926 = vsel %vm536, %v925, %v924
    %v927 = vsel %vm838, %v926, 0
    %929 = vmatpush.msra.mxu0 0.0
    %930 = vmatpush.msra.mxu0 0.0
    %931 = vmatpush.msra.mxu0 0.0
    %932 = vmatpush.msra.mxu0 0.0
    %933 = vmatpush.msra.mxu0 0.0
    %934 = vmatpush.msra.mxu0 0.0
    %935 = vmatpush.msra.mxu0 0.0
    %936 = vmatpush.msra.mxu0 0.0
    %937 = vmatpush.msra.mxu0 0.0
    %938 = vmatpush.msra.mxu0 0.0
    %939 = vmatpush.msra.mxu0 0.0
    %940 = vmatpush.msra.mxu0 0.0
    %941 = vmatpush.msra.mxu0 0.0
    %942 = vmatpush.msra.mxu0 0.0
    %943 = vmatpush.msra.mxu0 %v921
    %944 = vmatpush.msra.mxu0 %v920
    %945 = vmatmul.f32.gmra.mxu0 %v927
    %v946 = vpop.f32.mrf.mxu0
    %v947 = vadd.f32 0.0, %v946
    %948 = vdwg.mxu0
    %v949 = vadd.f32 %v918, %v947
    %s950 = scalar_lea.vmem [#allocation4], 64
    %v951 = vld [vmem:[%s950] sm:$0xff]
    %v952 = vld [vmem:[%s950 + $0x8] sm:$0xff]
    %v955 = vperm.slane %v816, 0
    %v956 = vperm.slane %v824, 0
    %v957 = vsel %vm536, %v956, %v955
    %v958 = vsel %vm838, %v957, 0
    %960 = vmatpush.msra.mxu0 0.0
    %961 = vmatpush.msra.mxu0 0.0
    %962 = vmatpush.msra.mxu0 0.0
    %963 = vmatpush.msra.mxu0 0.0
    %964 = vmatpush.msra.mxu0 0.0
    %965 = vmatpush.msra.mxu0 0.0
    %966 = vmatpush.msra.mxu0 0.0
    %967 = vmatpush.msra.mxu0 0.0
    %968 = vmatpush.msra.mxu0 0.0
    %969 = vmatpush.msra.mxu0 0.0
    %970 = vmatpush.msra.mxu0 0.0
    %971 = vmatpush.msra.mxu0 0.0
    %972 = vmatpush.msra.mxu0 0.0
    %973 = vmatpush.msra.mxu0 0.0
    %974 = vmatpush.msra.mxu0 %v952
    %975 = vmatpush.msra.mxu0 %v951
    %976 = vmatmul.f32.gmra.mxu0 %v958
    %v977 = vpop.f32.mrf.mxu0
    %v978 = vadd.f32 0.0, %v977
    %979 = vdwg.mxu0
    %v980 = vadd.f32 %v949, %v978
    %s981 = scalar_lea.vmem [#allocation4], 80
    %v982 = vld [vmem:[%s981] sm:$0xff]
    %v983 = vld [vmem:[%s981 + $0x8] sm:$0xff]
    %v986 = vperm.slane %v817, 0
    %v987 = vperm.slane %v825, 0
    %v988 = vsel %vm536, %v987, %v986
    %v989 = vsel %vm838, %v988, 0
    %991 = vmatpush.msra.mxu0 0.0
    %992 = vmatpush.msra.mxu0 0.0
    %993 = vmatpush.msra.mxu0 0.0
    %994 = vmatpush.msra.mxu0 0.0
    %995 = vmatpush.msra.mxu0 0.0
    %996 = vmatpush.msra.mxu0 0.0
    %997 = vmatpush.msra.mxu0 0.0
    %998 = vmatpush.msra.mxu0 0.0
    %999 = vmatpush.msra.mxu0 0.0
    %1000 = vmatpush.msra.mxu0 0.0
    %1001 = vmatpush.msra.mxu0 0.0
    %1002 = vmatpush.msra.mxu0 0.0
    %1003 = vmatpush.msra.mxu0 0.0
    %1004 = vmatpush.msra.mxu0 0.0
    %1005 = vmatpush.msra.mxu0 %v983
    %1006 = vmatpush.msra.mxu0 %v982
    %1007 = vmatmul.f32.gmra.mxu0 %v989
    %v1008 = vpop.f32.mrf.mxu0
    %v1009 = vadd.f32 0.0, %v1008
    %1010 = vdwg.mxu0
    %v1011 = vadd.f32 %v980, %v1009
    %s1012 = scalar_lea.vmem [#allocation4], 96
    %v1013 = vld [vmem:[%s1012] sm:$0xff]
    %v1014 = vld [vmem:[%s1012 + $0x8] sm:$0xff]
    %v1017 = vperm.slane %v818, 0
    %v1018 = vperm.slane %v826, 0
    %v1019 = vsel %vm536, %v1018, %v1017
    %v1020 = vsel %vm838, %v1019, 0
    %1022 = vmatpush.msra.mxu0 0.0
    %1023 = vmatpush.msra.mxu0 0.0
    %1024 = vmatpush.msra.mxu0 0.0
    %1025 = vmatpush.msra.mxu0 0.0
    %1026 = vmatpush.msra.mxu0 0.0
    %1027 = vmatpush.msra.mxu0 0.0
    %1028 = vmatpush.msra.mxu0 0.0
    %1029 = vmatpush.msra.mxu0 0.0
    %1030 = vmatpush.msra.mxu0 0.0
    %1031 = vmatpush.msra.mxu0 0.0
    %1032 = vmatpush.msra.mxu0 0.0
    %1033 = vmatpush.msra.mxu0 0.0
    %1034 = vmatpush.msra.mxu0 0.0
    %1035 = vmatpush.msra.mxu0 0.0
    %1036 = vmatpush.msra.mxu0 %v1014
    %1037 = vmatpush.msra.mxu0 %v1013
    %1038 = vmatmul.f32.gmra.mxu0 %v1020
    %v1039 = vpop.f32.mrf.mxu0
    %v1040 = vadd.f32 0.0, %v1039
    %1041 = vdwg.mxu0
    %v1042 = vadd.f32 %v1011, %v1040
    %s1043 = scalar_lea.vmem [#allocation4], 112
    %v1044 = vld [vmem:[%s1043] sm:$0xff]
    %v1045 = vld [vmem:[%s1043 + $0x8] sm:$0xff]
    %v1048 = vperm.slane %v819, 0
    %v1049 = vperm.slane %v827, 0
    %v1050 = vsel %vm536, %v1049, %v1048
    %v1051 = vsel %vm838, %v1050, 0
    %1053 = vmatpush.msra.mxu0 0.0
    %1054 = vmatpush.msra.mxu0 0.0
    %1055 = vmatpush.msra.mxu0 0.0
    %1056 = vmatpush.msra.mxu0 0.0
    %1057 = vmatpush.msra.mxu0 0.0
    %1058 = vmatpush.msra.mxu0 0.0
    %1059 = vmatpush.msra.mxu0 0.0
    %1060 = vmatpush.msra.mxu0 0.0
    %1061 = vmatpush.msra.mxu0 0.0
    %1062 = vmatpush.msra.mxu0 0.0
    %1063 = vmatpush.msra.mxu0 0.0
    %1064 = vmatpush.msra.mxu0 0.0
    %1065 = vmatpush.msra.mxu0 0.0
    %1066 = vmatpush.msra.mxu0 0.0
    %1067 = vmatpush.msra.mxu0 %v1045
    %1068 = vmatpush.msra.mxu0 %v1044
    %1069 = vmatmul.f32.gmra.mxu0 %v1051
    %v1070 = vpop.f32.mrf.mxu0
    %v1071 = vadd.f32 0.0, %v1070
    %1072 = vdwg.mxu0
    %v1073 = vadd.f32 %v1042, %v1071
    %v1074 = vld [vmem:[%s6] sm:$0x1]
    %v1076 = vperm.slane %v1074, 0
    %v1078 = vadd.f32 %v1073, %v1076
    %vm1079 = vcmask 254976
    %1080 = vst.msk [vmem:[#allocation7] sm:$0x3] %vm1079, %v1078
    // Predicated region
    $region34: #{tpu_custom_call.1} parent=1 // pred_check
      _
    $region35: #{tpu_custom_call.1} parent=1 // pred_check_branch
      %1082 = sbr.rel (0) target = $region37
    $region36: #{tpu_custom_call.1} parent=1 // pred_region
      %1084 = vsyncadd [#allocation6], 0
      %s1086 = sshll.u32 [#allocation7], 4
      %s1087 = int_to_ptr.vmem [resolvable:$true] %s1086
      %s1088 = sshll.u32 %s7, 4
      %s1089 = int_to_ptr.hbm [resolvable:$true] %s1088
      %1091 = dma.vmem_to_hbm [thread:$0]  %s1087, 32, %s1089, [#allocation6]
    $region37: #{tpu_custom_call.1} parent=1 // pred_fallthru
      _
    // Predicated region
    $region38: #{tpu_custom_call.1} parent=1 // pred_check
      _
    $region39: #{tpu_custom_call.1} parent=1 // pred_check_branch
      %1093 = sbr.rel (0) target = $region41
    $region40: #{tpu_custom_call.1} parent=1 // pred_region
      %1095 = dma.done [#allocation6], 32
    $region41: #{tpu_custom_call.1} parent=1 // pred_fallthru
      _
    %1096 = vsyncpa [#allocation5], 1
    %1097 = vsyncpa [#allocation6], 1

</llo_original>
